<compile_context>
chip_gen: v6e
topology: v6e:2x2x1
jax: 0.10.0
libtpu: 0.0.40
codegen_flags: <defaults>
</compile_context>

<pallas_src>
import jax
import jax.numpy as jnp
from jax.experimental import pallas as pl
from jax.experimental.pallas import tpu as pltpu

_C_IN = 16    # packed input rows (15 used + 1 pad -> multiple of 8 sublanes)
_C_OUT = 13   # output rows
_LANE = 128   # lane alignment


def _round_up(x, m):
    return ((x + m - 1) // m) * m


def _cdiv(a, b):
    return (a + b - 1) // b


def _postproc_kernel(scal_ref,   # SMEM (8,)  [fx, cx, tx, fy, cy, ty, 1/fx, 1/fy]
                     x_ref,      # VMEM (16, TN) packed feature-major per-object data
                     out_ref):   # VMEM (13, TN)
    fx = scal_ref[0]
    cx = scal_ref[1]
    tx = scal_ref[2]
    cy = scal_ref[4]
    ty = scal_ref[5]
    inv_fx = scal_ref[6]
    inv_fy = scal_ref[7]

    x = x_ref[...]                                           # (16, TN)

    # rows 0:9 are pass-through and already in output order:
    #   labels, probits, boxes_2d(x1,y1,x2,y2), size(3)
    out_ref[0:9, :] = x[0:9, :]

    # distance = fx * H * h_rec
    H = x[9:10, :]
    h_rec = x[10:11, :]
    depth = fx * H * h_rec                                   # (1, TN)

    # rotation_y = atan2(sin, cos)
    rot_y = jnp.arctan2(x[11:12, :], x[12:13, :])            # (1, TN)

    # inverse-normalize only the center keypoint by the 2D proposal box
    x1 = x[2:3, :]
    y1 = x[3:4, :]
    w = x[4:5, :] - x1
    h = x[5:6, :] - y1
    u = x[13:14, :] * w + x1                                 # (1, TN) center x (pixels)
    v = x[14:15, :] * h + y1                                 # (1, TN) center y (pixels)

    # pinhole unprojection, divides replaced by precomputed reciprocals
    x3d = ((u - cx) * depth - tx) * inv_fx
    y3d = ((v - cy) * depth - ty) * inv_fy

    # one contiguous store of all computed rows
    out_ref[9:13, :] = jnp.concatenate([x3d, y3d, depth, rot_y], axis=0)


def _reference(prediction, projection_matrix):
    """Pure-JAX path mirroring the PyTorch module (also used for small N)."""
    class_probits, boxes_2d, labels = prediction['faster-rcnn']
    dist_out, size, yaw, keypoints = prediction['mono-rcnn']
    proj = projection_matrix.reshape(-1, projection_matrix.shape[-2],
                                     projection_matrix.shape[-1])[0]
    fx, cx, tx = proj[0, 0], proj[0, 2], proj[0, 3]
    fy, cy, ty = proj[1, 1], proj[1, 2], proj[1, 3]
    n = boxes_2d.shape[0]

    H = dist_out[:, 0]
    h_rec = dist_out[:, 2]
    depth = fx * H * h_rec
    rot_y = jnp.arctan2(yaw[:, 0], yaw[:, 1]).reshape(n, 1)

    x1, y1 = boxes_2d[:, 0:1], boxes_2d[:, 1:2]
    w = boxes_2d[:, 2:3] - x1
    h = boxes_2d[:, 3:4] - y1
    kp_x = keypoints[:, 0, :] * w + x1
    kp_y = keypoints[:, 1, :] * h + y1
    u, v = kp_x[:, -1], kp_y[:, -1]

    x3d = (u * depth - cx * depth - tx) / fx
    y3d = (v * depth - cy * depth - ty) / fy
    center_3d = jnp.stack([x3d, y3d, depth], axis=-1)
    boxes_3d = jnp.concatenate([size, center_3d, rot_y], axis=-1)
    return jnp.concatenate(
        [labels.reshape(n, 1).astype(jnp.float32),
         class_probits.reshape(n, 1).astype(jnp.float32),
         boxes_2d.astype(jnp.float32),
         boxes_3d.astype(jnp.float32)], axis=-1)


def prediction_postprocessor(prediction, projection_matrix, *,
                             min_rows_for_pallas=64, max_lane_tile=32768):
    """JAX/Pallas equivalent of PredictionPostprocessor.forward.

    prediction: dict with
      'rpn'        : filtered proposals (unused, interface parity)
      'faster-rcnn': (class_probits (N,), bounding_boxes_2d (N,4), labels (N,))
      'mono-rcnn'  : (distance_head_output (N,4), size (N,3), yaw (N,2),
                      keypoints (N,2,K))
    projection_matrix: (1, 3, 4)
    returns: (N, 13) float32
    """
    class_probits, boxes_2d, labels = prediction['faster-rcnn']
    dist_out, size, yaw, keypoints = prediction['mono-rcnn']

    n = boxes_2d.shape[0]
    if n == 0 or dist_out.shape[0] == 0:
        return jnp.zeros((0, _C_OUT), jnp.float32)

    if n < min_rows_for_pallas:
        # At tiny N the whole problem is one vreg; kernel dispatch overhead
        # dominates -> use the fused pure-JAX path.
        return _reference(prediction, projection_matrix)

    f32 = jnp.float32
    proj = projection_matrix.reshape(-1, projection_matrix.shape[-2],
                                     projection_matrix.shape[-1])[0].astype(f32)
    fx, cx, tx = proj[0, 0], proj[0, 2], proj[0, 3]
    fy, cy, ty = proj[1, 1], proj[1, 2], proj[1, 3]
    scalars = jnp.stack([fx, cx, tx, fy, cy, ty,
                         jnp.float32(1.0) / fx, jnp.float32(1.0) / fy]).astype(f32)

    # Lane tile selection: multiple of 128, last block nearly full, large tile
    # to amortize per-grid-step overhead (still small vs any VMEM limit).
    n_lane = _round_up(n, _LANE)                  # minimal lane alignment
    num_blocks = _cdiv(n_lane, max_lane_tile)
    tn = _round_up(_cdiv(n_lane, num_blocks), _LANE)
    grid = _cdiv(n_lane, tn)
    n_total = grid * tn                           # residual pad < 128*grid lanes
    pad = n_total - n

    def row(a):
        a = a.astype(f32)
        return jnp.pad(a, (0, pad)) if pad else a

    # Feature-major, lane-dense slab; first 9 rows match the output layout.
    packed = jnp.stack([
        row(labels),                              # 0
        row(class_probits),                       # 1
        row(boxes_2d[:, 0]),                      # 2  x1
        row(boxes_2d[:, 1]),                      # 3  y1
        row(boxes_2d[:, 2]),                      # 4  x2
        row(boxes_2d[:, 3]),                      # 5  y2
        row(size[:, 0]),                          # 6
        row(size[:, 1]),                          # 7
        row(size[:, 2]),                          # 8
        row(dist_out[:, 0]),                      # 9  H
        row(dist_out[:, 2]),                      # 10 h_rec
        row(yaw[:, 0]),                           # 11 sin
        row(yaw[:, 1]),                           # 12 cos
        row(keypoints[:, 0, -1]),                 # 13 center kp x (normalized)
        row(keypoints[:, 1, -1]),                 # 14 center kp y (normalized)
        jnp.zeros((n_total,), f32),               # 15 pad (sublane alignment)
    ], axis=0)                                    # (16, n_total)

    out_t = pl.pallas_call(
        _postproc_kernel,
        out_shape=jax.ShapeDtypeStruct((_C_OUT, n_total), f32),
        grid=(grid,),
        in_specs=[
            pl.BlockSpec(memory_space=pltpu.MemorySpace.SMEM),   # scalars (8,)
            pl.BlockSpec((_C_IN, tn), lambda i: (0, i)),         # packed slab
        ],
        out_specs=pl.BlockSpec((_C_OUT, tn), lambda i: (0, i)),
        compiler_params=pltpu.CompilerParams(
            dimension_semantics=("parallel",)),
    )(scalars, packed)

    # slice away the lane padding, then back to the module's (N, 13) layout
    return out_t[:, :n].T


def _make_inputs(key, n, k):
    ks = jax.random.split(key, 8)
    class_probits = jax.random.uniform(ks[0], (n,), jnp.float32)
    x1y1 = jax.random.uniform(ks[1], (n, 2), jnp.float32, 0.0, 300.0)
    wh = jax.random.uniform(ks[2], (n, 2), jnp.float32, 20.0, 120.0)
    boxes_2d = jnp.concatenate([x1y1, x1y1 + wh], axis=-1)
    labels = jax.random.randint(ks[3], (n,), 0, 5).astype(jnp.float32)

    dist_out = jax.random.uniform(ks[4], (n, 4), jnp.float32, 0.01, 2.0)
    size3d = jax.random.uniform(ks[5], (n, 3), jnp.float32, 0.5, 4.0)
    yaw = jax.random.normal(ks[6], (n, 2), jnp.float32)
    keypoints = jax.random.uniform(ks[7], (n, 2, k), jnp.float32)

    prediction = {
        'rpn': boxes_2d,  # unused by forward, kept for interface parity
        'faster-rcnn': (class_probits, boxes_2d, labels),
        'mono-rcnn': (dist_out, size3d, yaw, keypoints),
    }
    return prediction


if __name__ == "__main__":
    key = jax.random.PRNGKey(0)
    projection_matrix = jnp.array(
        [[[700.0, 0.0, 320.0, 44.8],
          [0.0, 700.0, 240.0, 0.2],
          [0.0, 0.0, 1.0, 0.003]]], dtype=jnp.float32)

    K = 8  # keypoints per object (last one = object center)

    # Case 1: small N, forced through the Pallas kernel (one 128-lane tile).
    pred_small = _make_inputs(key, 8, K)
    out_small = prediction_postprocessor(pred_small, projection_matrix,
                                         min_rows_for_pallas=1)
    out_small = jax.block_until_ready(out_small)
    ref_small = _reference(pred_small, projection_matrix)
    assert out_small.shape == (8, 13), out_small.shape
    assert jnp.allclose(out_small, ref_small, atol=1e-4, rtol=1e-4)

    # Case 2: larger N exercising lane padding + the "parallel" grid.
    pred_big = _make_inputs(jax.random.PRNGKey(1), 2000, K)
    out_big = prediction_postprocessor(pred_big, projection_matrix)
    out_big = jax.block_until_ready(out_big)
    ref_big = _reference(pred_big, projection_matrix)
    assert out_big.shape == (2000, 13), out_big.shape
    assert jnp.allclose(out_big, ref_big, atol=1e-4, rtol=1e-4)

    # Case 3: multi-block grid (small tile forces >1 block, uneven last block).
    pred_multi = _make_inputs(jax.random.PRNGKey(2), 1025, K)
    out_multi = prediction_postprocessor(pred_multi, projection_matrix,
                                         max_lane_tile=512)
    out_multi = jax.block_until_ready(out_multi)
    ref_multi = _reference(pred_multi, projection_matrix)
    assert out_multi.shape == (1025, 13), out_multi.shape
    assert jnp.allclose(out_multi, ref_multi, atol=1e-4, rtol=1e-4)

    # Case 4: tiny-N fast path (pure JAX fallback) still matches.
    out_tiny = prediction_postprocessor(pred_small, projection_matrix)
    out_tiny = jax.block_until_ready(out_tiny)
    assert jnp.allclose(out_tiny, ref_small, atol=1e-4, rtol=1e-4)

    print("KERNEL_OK")
</pallas_src>

<mosaic_0001>
module attributes {stable_mosaic.version = 11 : i64} {
  func.func @_postproc_kernel(%arg0: i32, %arg1: memref<8xf32, #tpu.memory_space<smem>>, %arg2: memref<16x128xf32, #tpu.memory_space<vmem>>, %arg3: memref<13x128xf32, #tpu.memory_space<vmem>>) attributes {dimension_semantics = [#tpu.dimension_semantics<parallel>], iteration_bounds = array<i64: 1>, scalar_prefetch = 0 : i64, scratch_operands = 0 : i64, tpu.core_type = #tpu.core_type<tc>, window_params = [{transform_indices = @transform_0, window_bounds = array<i64: 8>}, {transform_indices = @transform_1, window_bounds = array<i64: 16, 128>}, {transform_indices = @transform_2, window_bounds = array<i64: 13, 128>}]} {
    %c0 = arith.constant 0 : index
    %0 = memref.load %arg1[%c0] : memref<8xf32, #tpu.memory_space<smem>>
    %c1 = arith.constant 1 : index
    %1 = memref.load %arg1[%c1] : memref<8xf32, #tpu.memory_space<smem>>
    %c2 = arith.constant 2 : index
    %2 = memref.load %arg1[%c2] : memref<8xf32, #tpu.memory_space<smem>>
    %c4 = arith.constant 4 : index
    %3 = memref.load %arg1[%c4] : memref<8xf32, #tpu.memory_space<smem>>
    %c5 = arith.constant 5 : index
    %4 = memref.load %arg1[%c5] : memref<8xf32, #tpu.memory_space<smem>>
    %c6 = arith.constant 6 : index
    %5 = memref.load %arg1[%c6] : memref<8xf32, #tpu.memory_space<smem>>
    %c7 = arith.constant 7 : index
    %6 = memref.load %arg1[%c7] : memref<8xf32, #tpu.memory_space<smem>>
    %c0_0 = arith.constant 0 : index
    %c0_1 = arith.constant 0 : index
    %7 = vector.load %arg2[%c0_0, %c0_1] : memref<16x128xf32, #tpu.memory_space<vmem>>, vector<16x128xf32>
    %8 = vector.extract_strided_slice %7 {offsets = [0, 0], sizes = [9, 128], strides = [1, 1]} : vector<16x128xf32> to vector<9x128xf32>
    %c0_2 = arith.constant 0 : index
    %c0_3 = arith.constant 0 : index
    %9 = vector.load %arg3[%c0_2, %c0_3] : memref<13x128xf32, #tpu.memory_space<vmem>>, vector<9x128xf32>
    tpu.vector_store %arg3[%c0_2, %c0_3], %8 {strides = array<i32>} : memref<13x128xf32, #tpu.memory_space<vmem>>, vector<9x128xf32>,
    %10 = vector.extract_strided_slice %7 {offsets = [9, 0], sizes = [1, 128], strides = [1, 1]} : vector<16x128xf32> to vector<1x128xf32>
    %11 = vector.extract_strided_slice %7 {offsets = [10, 0], sizes = [1, 128], strides = [1, 1]} : vector<16x128xf32> to vector<1x128xf32>
    %12 = vector.broadcast %0 : f32 to vector<1x128xf32>
    %13 = arith.mulf %12, %10 : vector<1x128xf32>
    %14 = arith.mulf %13, %11 : vector<1x128xf32>
    %15 = vector.extract_strided_slice %7 {offsets = [11, 0], sizes = [1, 128], strides = [1, 1]} : vector<16x128xf32> to vector<1x128xf32>
    %16 = vector.extract_strided_slice %7 {offsets = [12, 0], sizes = [1, 128], strides = [1, 1]} : vector<16x128xf32> to vector<1x128xf32>
    %17 = math.atan2 %15, %16 : vector<1x128xf32>
    %18 = vector.extract_strided_slice %7 {offsets = [2, 0], sizes = [1, 128], strides = [1, 1]} : vector<16x128xf32> to vector<1x128xf32>
    %19 = vector.extract_strided_slice %7 {offsets = [3, 0], sizes = [1, 128], strides = [1, 1]} : vector<16x128xf32> to vector<1x128xf32>
    %20 = vector.extract_strided_slice %7 {offsets = [4, 0], sizes = [1, 128], strides = [1, 1]} : vector<16x128xf32> to vector<1x128xf32>
    %21 = arith.subf %20, %18 : vector<1x128xf32>
    %22 = vector.extract_strided_slice %7 {offsets = [5, 0], sizes = [1, 128], strides = [1, 1]} : vector<16x128xf32> to vector<1x128xf32>
    %23 = arith.subf %22, %19 : vector<1x128xf32>
    %24 = vector.extract_strided_slice %7 {offsets = [13, 0], sizes = [1, 128], strides = [1, 1]} : vector<16x128xf32> to vector<1x128xf32>
    %25 = arith.mulf %24, %21 : vector<1x128xf32>
    %26 = arith.addf %25, %18 : vector<1x128xf32>
    %27 = vector.extract_strided_slice %7 {offsets = [14, 0], sizes = [1, 128], strides = [1, 1]} : vector<16x128xf32> to vector<1x128xf32>
    %28 = arith.mulf %27, %23 : vector<1x128xf32>
    %29 = arith.addf %28, %19 : vector<1x128xf32>
    %30 = vector.broadcast %1 : f32 to vector<1x128xf32>
    %31 = arith.subf %26, %30 : vector<1x128xf32>
    %32 = arith.mulf %31, %14 : vector<1x128xf32>
    %33 = vector.broadcast %2 : f32 to vector<1x128xf32>
    %34 = arith.subf %32, %33 : vector<1x128xf32>
    %35 = vector.broadcast %5 : f32 to vector<1x128xf32>
    %36 = arith.mulf %34, %35 : vector<1x128xf32>
    %37 = vector.broadcast %3 : f32 to vector<1x128xf32>
    %38 = arith.subf %29, %37 : vector<1x128xf32>
    %39 = arith.mulf %38, %14 : vector<1x128xf32>
    %40 = vector.broadcast %4 : f32 to vector<1x128xf32>
    %41 = arith.subf %39, %40 : vector<1x128xf32>
    %42 = vector.broadcast %6 : f32 to vector<1x128xf32>
    %43 = arith.mulf %41, %42 : vector<1x128xf32>
    %44 = tpu.concatenate %36, %43, %14, %17 in 0 : vector<1x128xf32>, vector<1x128xf32>, vector<1x128xf32>, vector<1x128xf32> -> vector<4x128xf32>
    %c9 = arith.constant 9 : index
    %c0_4 = arith.constant 0 : index
    %45 = vector.load %arg3[%c9, %c0_4] : memref<13x128xf32, #tpu.memory_space<vmem>>, vector<4x128xf32>
    tpu.vector_store %arg3[%c9, %c0_4], %44 {strides = array<i32>} : memref<13x128xf32, #tpu.memory_space<vmem>>, vector<4x128xf32>,
    return
  }
  func.func @transform_0(%arg0: i32) -> i32 {
    %c0_i32 = arith.constant 0 : i32
    %c0_i32_0 = arith.constant 0 : i32
    return %c0_i32 : i32
  }
  func.func @transform_1(%arg0: i32) -> (i32, i32) {
    %c0_i32 = arith.constant 0 : i32
    %c0_i32_0 = arith.constant 0 : i32
    return %c0_i32, %arg0 : i32, i32
  }
  func.func @transform_2(%arg0: i32) -> (i32, i32) {
    %c0_i32 = arith.constant 0 : i32
    %c0_i32_0 = arith.constant 0 : i32
    return %c0_i32, %arg0 : i32, i32
  }
}

</mosaic_0001>

<llo_original>
// kernel: tpu_custom_call.1
$region0: #{tpu_custom_call.1}
  #allocation0 [shape = 'u32[]', space=smem, size = 0x4, offset = 0x4, fixed_abs, tag = 'smem constant byte address 0x4 - core index']
  #allocation1 [shape = 'u32[144,128]{1,0:T(1,128)}', space=vmem, size = 0x12000, scoped, tag = 'internal scratch']
  %s0 = inlined_call_operand.hbm [shape: f32[8], index: 0, kind: input, shape index: {}]
  %s1 = inlined_call_operand.hbm [shape: f32[16,128], index: 1, kind: input, shape index: {}]
  %s2 = inlined_call_operand.hbm [shape: f32[13,128], index: 2, kind: output, shape index: {}]
  %s3 = sld [smem:[#allocation0]]
  $region26: #{tpu_custom_call.1} parent=0
    _
  %s5 = ssub.s32 1, %s3
  %s6 = scalar_select 0, %s5, %s3
  $region1: #{tpu_custom_call.1} parent=0
    #allocation2 [shape = 'u8[512]{0}', space=smem, size = 0x200, scoped, tag = 'input window, operand 0, single buffered']
    #allocation3 [shape = 's32[1]{0}', space=sflag, size = 0x4, scoped, tag = 'scoped memory for tpu_custom_call.1']
    #allocation4 [shape = 's32[1]{0}', space=sflag, size = 0x4, scoped, tag = 'scoped memory for tpu_custom_call.1']
    #allocation5 [shape = 's32[1]{0}', space=sflag, size = 0x4, scoped, tag = 'scoped memory for tpu_custom_call.1']
    #allocation6 [shape = 'u8[8192]{0}', space=vmem, size = 0x2000, scoped, tag = 'input window, operand 1, single buffered']
    #allocation7 [shape = 'u8[8192]{0}', space=vmem, size = 0x2000, scoped, tag = 'output window, operand 0, single buffered']
    %7 = vsyncpa [#allocation5], 0
    %8 = vsyncpa [#allocation3], 0
    %9 = vsyncpa [#allocation4], 0
    // Predicated region
    $region2: #{tpu_custom_call.1} parent=1 // pred_check
      _
    $region3: #{tpu_custom_call.1} parent=1 // pred_check_branch
      %11 = sbr.rel (0) target = $region5
    $region4: #{tpu_custom_call.1} parent=1 // pred_region
      %s13 = ssub.s32 16, 16
      %14 = vsyncadd [#allocation5], %s13
      %17 = dma.hbm_to_smem %s0, 16, [#allocation2], [#allocation5]
    $region5: #{tpu_custom_call.1} parent=1 // pred_fallthru
      _
    // Predicated region
    $region6: #{tpu_custom_call.1} parent=1 // pred_check
      _
    $region7: #{tpu_custom_call.1} parent=1 // pred_check_branch
      %19 = sbr.rel (0) target = $region9
    $region8: #{tpu_custom_call.1} parent=1 // pred_region
      %s21 = ssub.s32 256, 256
      %22 = vsyncadd [#allocation3], %s21
      %s23 = sshll.u32 [#allocation6], 4
      %s24 = int_to_ptr.vmem [resolvable:$true] %s23
      %29 = dma.hbm_to_vmem [thread:$0]  %s1, 256, %s24, [#allocation3], 128, 128, 8
    $region9: #{tpu_custom_call.1} parent=1 // pred_fallthru
      _
    // Predicated region
    $region10: #{tpu_custom_call.1} parent=1 // pred_check
      _
    $region11: #{tpu_custom_call.1} parent=1 // pred_check_branch
      %31 = sbr.rel (0) target = $region13
    $region12: #{tpu_custom_call.1} parent=1 // pred_region
      %32 = dma.done [#allocation5], 16
    $region13: #{tpu_custom_call.1} parent=1 // pred_fallthru
      _
    // Predicated region
    $region14: #{tpu_custom_call.1} parent=1 // pred_check
      _
    $region15: #{tpu_custom_call.1} parent=1 // pred_check_branch
      %34 = sbr.rel (0) target = $region17
    $region16: #{tpu_custom_call.1} parent=1 // pred_region
      %35 = dma.done [#allocation3], 256
    $region17: #{tpu_custom_call.1} parent=1 // pred_fallthru
      _
    %36 = sfence
    %s37 = sld [smem:[#allocation2]]
    %s38 = sld [smem:[#allocation2 + $0x1]]
    %s39 = sld [smem:[#allocation2 + $0x2]]
    %s40 = sld [smem:[#allocation2 + $0x4]]
    %s41 = sld [smem:[#allocation2 + $0x5]]
    %s42 = sld [smem:[#allocation2 + $0x6]]
    %s43 = sld [smem:[#allocation2 + $0x7]]
    %v44 = vld [vmem:[#allocation6] sm:$0xff]
    %v45 = vld [vmem:[#allocation6 + $0x8] sm:$0xff]
    %46 = vst [vmem:[#allocation7] sm:$0xff] %v44
    %47 = vst [vmem:[#allocation7 + $0x8] sm:$0x1] %v45
    %v48 = vstv %s37
    %v49 = vmul.f32 %v48, %v45
    %v51 = vrot.slane %v45, 1
    %v53 = vmul.f32 %v49, %v51
    %v54 = vand.u32 2147483647, %v51
    %v55 = vand.u32 2147483647, %v45
    %v56 = vmin.f32 %v54, %v55
    %v57 = vmax.f32 %v54, %v55
    %v58 = vrcp.pop %v57
    %v59 = vmul.f32 %v56, %v58
    %v60 = vmul.f32 %v59, %v59
    %v61 = vmul.f32 0.002785687, %v60
    %v62 = vadd.f32 %v61, -0.015866
    %v63 = vmul.f32 %v62, %v60
    %v64 = vadd.f32 %v63, 0.04247222
    %v65 = vmul.f32 %v64, %v60
    %v66 = vadd.f32 %v65, -0.074975304
    %v67 = vmul.f32 %v66, %v60
    %v68 = vadd.f32 %v67, 0.1064488
    %v69 = vmul.f32 %v68, %v60
    %v70 = vadd.f32 %v69, -0.14207031
    %v71 = vmul.f32 %v70, %v60
    %v72 = vadd.f32 %v71, 0.19993454
    %v73 = vmul.f32 %v72, %v60
    %v74 = vadd.f32 %v73, -0.33333147
    %v75 = vmul.f32 %v74, %v60
    %v76 = vmul.f32 %v75, %v59
    %v77 = vadd.f32 %v76, %v59
    %vm78 = vcmp.gt.f32.partialorder %v55, %v54
    %v79 = vsub.f32 1.5707964, %v77
    %v80 = vsel %vm78, %v79, %v77
    %vm81 = vcmp.lt.f32.partialorder %v51, 0.0
    %v82 = vsub.f32 3.1415927, %v80
    %v83 = vsel %vm81, %v82, %v80
    %vm84 = vcmp.lt.s32.totalorder %v51, 0
    %v85 = vsel %vm84, 3.1415927, 0.0
    %vm86 = vcmp.eq.f32.partialorder %v45, 0.0
    %v87 = vsel %vm86, %v85, %v83
    %vm88 = vcmp.ne.f32.partialorder %v51, %v51
    %vm89 = vcmp.ne.f32.partialorder %v45, %v45
    %vm90 = vmor %vm88, %vm89
    %v91 = vsel %vm90, nan, %v87
    %vm92 = vcmp.lt.f32.partialorder %v51, 0.0
    %v93 = vsel %vm92, 2.3561945, 0.7853982
    %vm94 = vcmp.eq.s32.totalorder %v54, inf
    %vm95 = vcmp.eq.s32.totalorder %v55, inf
    %vm96 = vmand %vm94, %vm95
    %v97 = vsel %vm96, %v93, %v91
    %v98 = vand.u32 2147483647, %v97
    %v99 = vand.u32 %v45, 2147483648
    %v100 = vor.u32 %v98, %v99
    %v102 = vrot.slane %v44, 6
    %v104 = vsub.f32 %v44, %v102
    %v106 = vrot.slane %v104, 7
    %v108 = vmul.f32 %v45, %v106
    %v109 = vrot.slane %v44, 5
    %v111 = vadd.f32 %v108, %v109
    %v112 = vstv %s38
    %v113 = vsub.f32 %v111, %v112
    %v115 = vrot.slane %v53, 4
    %v117 = vmul.f32 %v113, %v115
    %v118 = vstv %s39
    %v119 = vsub.f32 %v117, %v118
    %v120 = vstv %s42
    %v121 = vmul.f32 %v119, %v120
    %v122 = vstv %s40
    %v123 = vsub.f32 %v111, %v122
    %v124 = vrot.slane %v53, 3
    %v126 = vmul.f32 %v123, %v124
    %v127 = vstv %s41
    %v128 = vsub.f32 %v126, %v127
    %v129 = vstv %s43
    %v130 = vmul.f32 %v128, %v129
    %v132 = vrot.slane %v121, 5
    %v135 = vrot.slane %v130, 5
    %v137 = vrot.slane %v53, 7
    %vm139 = vcmask 1040384
    %v140 = vsel %vm139, %v132, %v135
    %vm141 = vcmask 1041408
    %v142 = vsel %vm141, %v140, %v137
    %vm143 = vcmask 1042432
    %v144 = vsel %vm143, %v142, %v100
    %145 = vst [vmem:[#allocation7 + $0x9] sm:$0xf] %v144
    // Predicated region
    $region18: #{tpu_custom_call.1} parent=1 // pred_check
      _
    $region19: #{tpu_custom_call.1} parent=1 // pred_check_branch
      %147 = sbr.rel (0) target = $region21
    $region20: #{tpu_custom_call.1} parent=1 // pred_region
      %s149 = ssub.s32 256, 256
      %150 = vsyncadd [#allocation4], %s149
      %s151 = sshll.u32 [#allocation7], 4
      %s152 = int_to_ptr.vmem [resolvable:$true] %s151
      %157 = dma.vmem_to_hbm [thread:$0]  %s152, 256, %s2, [#allocation4], 128, 128, 8
    $region21: #{tpu_custom_call.1} parent=1 // pred_fallthru
      _
    // Predicated region
    $region22: #{tpu_custom_call.1} parent=1 // pred_check
      _
    $region23: #{tpu_custom_call.1} parent=1 // pred_check_branch
      %159 = sbr.rel (0) target = $region25
    $region24: #{tpu_custom_call.1} parent=1 // pred_region
      %160 = dma.done [#allocation4], 256
    $region25: #{tpu_custom_call.1} parent=1 // pred_fallthru
      _
    %161 = vsyncpa [#allocation3], 1
    %162 = vsyncpa [#allocation4], 1
    %163 = vsyncpa [#allocation5], 1

</llo_original>
